<compile_context>
chip_gen: v5e
topology: v5e:2x2
jax: 0.10.0
libtpu: 0.0.40
codegen_flags: <defaults>
</compile_context>

<pallas_src>
import functools

import jax
import jax.numpy as jnp
from jax import lax
from jax.experimental import pallas as pl
from jax.experimental.pallas import tpu as pltpu

_VMEM_LIMIT = 32 * 1024 * 1024


def _row_tile(m):
    for t in (1024, 512, 256, 128):
        if m % t == 0:
            return t
    return m


# ------------------------- K1: qkv 1x1 conv (row-tiled matmul) ----------------

def _qkv_matmul_kernel(x_ref, w_ref, o_ref):
    o_ref[...] = jnp.dot(x_ref[...], w_ref[...], preferred_element_type=jnp.float32)


def qkv_conv(x_rows, w):
    """(B*H*W, Cin) @ (Cin, 3*total_dim), tiled over rows."""
    M, K = x_rows.shape
    Co = w.shape[1]
    tm = _row_tile(M)
    return pl.pallas_call(
        _qkv_matmul_kernel,
        out_shape=jax.ShapeDtypeStruct((M, Co), jnp.float32),
        grid=(M // tm,),
        in_specs=[pl.BlockSpec((tm, K), lambda i: (i, 0)),
                  pl.BlockSpec((K, Co), lambda i: (0, 0))],
        out_specs=pl.BlockSpec((tm, Co), lambda i: (i, 0)),
        compiler_params=pltpu.CompilerParams(
            dimension_semantics=("parallel",),
            vmem_limit_bytes=_VMEM_LIMIT),
    )(x_rows, w)


# --------------- K2: fused 5x5 depthwise conv + grouped 1x1 conv --------------

def _aggreg_kernel(H, W, C, xp_ref, wdw_ref, wpw_ref, o_ref):
    # xp_ref : (1, H+4, W+4, C)  qkv activations with 2-pixel zero halo
    # wdw_ref: (25, C)           depthwise 5x5 taps, row = dy*5 + dx
    # wpw_ref: (C, C)            grouped 1x1 conv as block-diagonal matrix
    # o_ref  : (1, H*W, C)
    xp = xp_ref[0]                                   # (H+4, W+4, C)
    taps = wdw_ref[...]                              # (25, C)
    acc = jnp.zeros((H, W, C), jnp.float32)
    for dy in range(5):
        for dx in range(5):
            t = dy * 5 + dx
            tap = taps[t:t + 1, :].reshape(1, 1, C)  # (1, 1, C)
            acc = acc + xp[dy:dy + H, dx:dx + W, :] * tap
    dw = acc.reshape(H * W, C)
    # Grouped 1x1 conv as a dense block-diagonal matmul while the depthwise
    # result is still in VMEM (weight is tiny; avoids an HBM round trip).
    o_ref[0] = jnp.dot(dw, wpw_ref[...], preferred_element_type=jnp.float32)


def aggreg(qkv_padded, H, W, w_dw, w_pw_bd):
    B = qkv_padded.shape[0]
    C = qkv_padded.shape[-1]
    kernel = functools.partial(_aggreg_kernel, H, W, C)
    return pl.pallas_call(
        kernel,
        out_shape=jax.ShapeDtypeStruct((B, H * W, C), jnp.float32),
        grid=(B,),
        in_specs=[pl.BlockSpec((1, H + 4, W + 4, C), lambda b: (b, 0, 0, 0)),
                  pl.BlockSpec((25, C), lambda b: (0, 0)),
                  pl.BlockSpec((C, C), lambda b: (0, 0))],
        out_specs=pl.BlockSpec((1, H * W, C), lambda b: (b, 0, 0)),
        compiler_params=pltpu.CompilerParams(
            dimension_semantics=("parallel",),
            vmem_limit_bytes=_VMEM_LIMIT),
    )(qkv_padded, w_dw, w_pw_bd)


# --------- K3: linear attention (all heads) + proj + BatchNorm + residual -----

def _att_proj_kernel(heads, dim, eps, qkv_ref, agg_ref, x_ref,
                     wp_ref, s_ref, b_ref, o_ref):
    # qkv_ref / agg_ref : (1, N, 3*heads*dim)  channels-last activations
    # x_ref             : (1, N, Cin)          residual input rows
    # wp_ref            : (2*heads*dim, Cout)  proj 1x1 conv weight
    # s_ref, b_ref      : (1, Cout)            folded BatchNorm scale / bias
    # o_ref             : (1, N, Cout)
    n = o_ref.shape[1]
    cout = o_ref.shape[2]
    wp = wp_ref[...]
    acc = jnp.zeros((n, cout), jnp.float32)
    head_idx = 0
    for src_ref in (qkv_ref, agg_ref):          # == torch.cat([qkv, aggreg(qkv)], dim=1)
        src = src_ref[0]                        # (N, 3*heads*dim)
        src_relu = jnp.maximum(src, 0.0)        # kernel_func (used by q and k only)
        for h in range(heads):
            base = 3 * dim * h
            q = src_relu[:, base:base + dim]               # (N, dim)
            k = src_relu[:, base + dim:base + 2 * dim]     # (N, dim)
            v = src[:, base + 2 * dim:base + 3 * dim]      # (N, dim)
            # kv = k^T v  (contract over the N rows, no explicit transpose)
            kv = lax.dot_general(k, v, (((0,), (0,)), ((), ())),
                                 preferred_element_type=jnp.float32)      # (dim, dim)
            ksum = jnp.sum(k, axis=0, keepdims=True)                      # (1, dim)
            num = jnp.dot(q, kv, preferred_element_type=jnp.float32)      # (N, dim)
            den = jnp.sum(q * ksum, axis=-1, keepdims=True)               # (N, 1)
            out_h = num * pl.reciprocal(den + eps, approx=True)           # (N, dim)
            # fused 1x1 proj: accumulate this head's contribution directly
            acc = acc + jnp.dot(out_h, wp[head_idx * dim:(head_idx + 1) * dim, :],
                                preferred_element_type=jnp.float32)
            head_idx += 1
    # folded BatchNorm (eval mode) + residual add
    o_ref[0] = x_ref[0] + acc * s_ref[...] + b_ref[...]


def attention_proj(qkv_bnc, agg_bnc, x_bnc, w_proj, bn_scale, bn_bias,
                   *, heads, dim, eps):
    B, N, c3 = qkv_bnc.shape
    Cin = x_bnc.shape[-1]
    Cout = w_proj.shape[-1]
    assert Cin == Cout, "residual connection requires in_channels == out_channels"
    kernel = functools.partial(_att_proj_kernel, heads, dim, eps)
    return pl.pallas_call(
        kernel,
        out_shape=jax.ShapeDtypeStruct((B, N, Cout), jnp.float32),
        grid=(B,),
        in_specs=[pl.BlockSpec((1, N, c3), lambda b: (b, 0, 0)),
                  pl.BlockSpec((1, N, c3), lambda b: (b, 0, 0)),
                  pl.BlockSpec((1, N, Cin), lambda b: (b, 0, 0)),
                  pl.BlockSpec(w_proj.shape, lambda b: (0, 0)),
                  pl.BlockSpec((1, Cout), lambda b: (0, 0)),
                  pl.BlockSpec((1, Cout), lambda b: (0, 0))],
        out_specs=pl.BlockSpec((1, N, Cout), lambda b: (b, 0, 0)),
        compiler_params=pltpu.CompilerParams(
            dimension_semantics=("parallel",),
            vmem_limit_bytes=_VMEM_LIMIT),
    )(qkv_bnc, agg_bnc, x_bnc, w_proj,
      bn_scale.reshape(1, Cout), bn_bias.reshape(1, Cout))


# --------------------------------------------------------------------------
# Parameter initialization (synthetic, deterministic)
# --------------------------------------------------------------------------

def init_params(key, in_channels, out_channels, dim=8, heads_ratio=1.0):
    heads = int(in_channels // dim * heads_ratio)
    total_dim = heads * dim
    c3 = 3 * total_dim
    ks = jax.random.split(key, 8)

    # qkv: Conv2d(in_channels, 3*total_dim, 1, bias=False) -> (Cin, 3*total_dim)
    w_qkv = jax.random.normal(ks[0], (in_channels, c3), jnp.float32) / jnp.sqrt(in_channels)

    # aggreg[0][0]: depthwise 5x5, groups=c3 -> taps stored as (25, c3)
    w_dw = jax.random.normal(ks[1], (25, c3), jnp.float32) / 25.0

    # aggreg[0][1]: 1x1 conv, groups=3*heads -> block-diagonal (c3, c3) matrix
    g = 3 * heads
    gs = c3 // g
    w_pw = jax.random.normal(ks[2], (c3, gs), jnp.float32) / jnp.sqrt(gs)
    w_pw_bd = jnp.zeros((c3, c3), jnp.float32)
    for gi in range(g):
        blk = w_pw[gi * gs:(gi + 1) * gs]                  # (gs_out, gs_in)
        w_pw_bd = w_pw_bd.at[gi * gs:(gi + 1) * gs,
                             gi * gs:(gi + 1) * gs].set(blk.T)

    # proj: Conv2d(2*total_dim, out_channels, 1, bias=False) + BatchNorm2d (eval)
    w_proj = jax.random.normal(ks[3], (2 * total_dim, out_channels),
                               jnp.float32) / jnp.sqrt(2 * total_dim)
    gamma = 1.0 + 0.1 * jax.random.normal(ks[4], (out_channels,), jnp.float32)
    beta = 0.1 * jax.random.normal(ks[5], (out_channels,), jnp.float32)
    run_mean = 0.1 * jax.random.normal(ks[6], (out_channels,), jnp.float32)
    run_var = 1.0 + 0.1 * jax.random.uniform(ks[7], (out_channels,), jnp.float32)
    bn_eps = 1e-5
    bn_scale = gamma / jnp.sqrt(run_var + bn_eps)
    bn_bias = beta - run_mean * bn_scale

    return dict(w_qkv=w_qkv, w_dw=w_dw, w_pw_bd=w_pw_bd, w_proj=w_proj,
                bn_scale=bn_scale, bn_bias=bn_bias, dim=dim, heads=heads)


# --------------------------------------------------------------------------
# Forward (wrapper = layout glue only; all compute is in the 3 Pallas kernels)
# --------------------------------------------------------------------------

def res_lite_mla_forward(x_nchw, params, eps=1e-15):
    dim = params["dim"]
    heads = params["heads"]
    B, Cin, H, W = x_nchw.shape
    N = H * W
    # TODO(synk): relu_quadratic_att branch (H*W <= dim) not implemented; these
    # shapes always take the linear-attention branch like the PyTorch forward.
    assert N > dim

    x_nhwc = jnp.transpose(x_nchw, (0, 2, 3, 1)).astype(jnp.float32)  # (B,H,W,Cin)
    x_rows = x_nhwc.reshape(B * N, Cin)

    # K1: qkv 1x1 conv
    qkv_rows = qkv_conv(x_rows, params["w_qkv"])                      # (B*N, c3)
    c3 = qkv_rows.shape[-1]
    qkv_bnc = qkv_rows.reshape(B, N, c3)

    # K2: 5x5 depthwise conv + grouped 1x1 conv (fused).  The 2-pixel zero halo
    # is a tiny XLA pad; it keeps all in-kernel accesses as static value slices.
    qkv_pad = jnp.pad(qkv_rows.reshape(B, H, W, c3),
                      ((0, 0), (2, 2), (2, 2), (0, 0)))
    agg_bnc = aggreg(qkv_pad, H, W, params["w_dw"], params["w_pw_bd"])  # (B, N, c3)

    # K3: linear attention (all heads, channels-last) + proj + BN + residual
    # TODO(synk): BatchNorm is eval-mode (running stats folded); train-mode
    # batch statistics are not reproduced.
    out_rows = attention_proj(qkv_bnc, agg_bnc,
                              x_nhwc.reshape(B, N, Cin),
                              params["w_proj"], params["bn_scale"],
                              params["bn_bias"],
                              heads=heads, dim=dim, eps=eps)          # (B, N, Cout)

    Cout = out_rows.shape[-1]
    return jnp.transpose(out_rows.reshape(B, H, W, Cout), (0, 3, 1, 2))  # NCHW


# --------------------------------------------------------------------------

if __name__ == "__main__":
    key = jax.random.PRNGKey(0)
    kx, kp = jax.random.split(key)

    # in_channels == out_channels required by the residual connection.
    B, Cin, H, W = 2, 16, 16, 16
    x = jax.random.normal(kx, (B, Cin, H, W), jnp.float32)
    params = init_params(kp, in_channels=Cin, out_channels=Cin, dim=8)

    out = res_lite_mla_forward(x, params)
    out = jax.block_until_ready(out)
    assert out.shape == (B, Cin, H, W)
    assert bool(jnp.all(jnp.isfinite(out)))
    print("KERNEL_OK")
</pallas_src>

<mosaic_0001>
module attributes {stable_mosaic.version = 11 : i64} {
  func.func @_qkv_matmul_kernel(%arg0: i32, %arg1: memref<512x16xf32, #tpu.memory_space<vmem>>, %arg2: memref<16x48xf32, #tpu.memory_space<vmem>>, %arg3: memref<512x48xf32, #tpu.memory_space<vmem>>) attributes {dimension_semantics = [#tpu.dimension_semantics<parallel>], iteration_bounds = array<i64: 1>, scalar_prefetch = 0 : i64, scratch_operands = 0 : i64, tpu.core_type = #tpu.core_type<tc>, window_params = [{transform_indices = @transform_0, window_bounds = array<i64: 512, 16>}, {pipeline_mode = #tpu.pipeline_mode<synchronous>, transform_indices = @transform_1, window_bounds = array<i64: 16, 48>}, {transform_indices = @transform_2, window_bounds = array<i64: 512, 48>}]} {
    %c0 = arith.constant 0 : index
    %c0_0 = arith.constant 0 : index
    %0 = vector.load %arg1[%c0, %c0_0] : memref<512x16xf32, #tpu.memory_space<vmem>>, vector<512x16xf32>
    %c0_1 = arith.constant 0 : index
    %c0_2 = arith.constant 0 : index
    %1 = vector.load %arg2[%c0_1, %c0_2] : memref<16x48xf32, #tpu.memory_space<vmem>>, vector<16x48xf32>
    %cst = arith.constant dense<0.000000e+00> : vector<512x48xf32>
    %2 = tpu.matmul %0, %1, %cst {dimension_numbers = #tpu.dot_dimension_numbers<[1], [0], [0], [1], [0, 0, 1, 1], [], []>} : vector<512x16xf32>, vector<16x48xf32>, vector<512x48xf32> -> vector<512x48xf32>
    %c0_3 = arith.constant 0 : index
    %c0_4 = arith.constant 0 : index
    %3 = vector.load %arg3[%c0_3, %c0_4] : memref<512x48xf32, #tpu.memory_space<vmem>>, vector<512x48xf32>
    tpu.vector_store %arg3[%c0_3, %c0_4], %2 {strides = array<i32>} : memref<512x48xf32, #tpu.memory_space<vmem>>, vector<512x48xf32>,
    return
  }
  func.func @transform_0(%arg0: i32) -> (i32, i32) {
    %c0_i32 = arith.constant 0 : i32
    %c0_i32_0 = arith.constant 0 : i32
    return %arg0, %c0_i32 : i32, i32
  }
  func.func @transform_1(%arg0: i32) -> (i32, i32) {
    %c0_i32 = arith.constant 0 : i32
    %c0_i32_0 = arith.constant 0 : i32
    %c0_i32_1 = arith.constant 0 : i32
    return %c0_i32, %c0_i32_0 : i32, i32
  }
  func.func @transform_2(%arg0: i32) -> (i32, i32) {
    %c0_i32 = arith.constant 0 : i32
    %c0_i32_0 = arith.constant 0 : i32
    return %arg0, %c0_i32 : i32, i32
  }
}

</mosaic_0001>

<llo_original>
// kernel: tpu_custom_call.1
$region0: #{tpu_custom_call.1}
  #allocation0 [shape = 'u32[]', space=smem, size = 0x4, offset = 0x4, fixed_abs, tag = 'smem constant byte address 0x4 - core index']
  #allocation1 [shape = 'u32[72,128]{1,0:T(1,128)}', space=vmem, size = 0x9000, scoped, tag = 'internal scratch']
  %s0 = inlined_call_operand.vmem [shape: f32[512,16], index: 0, kind: input, shape index: {}]
  %s1 = inlined_call_operand.vmem [shape: f32[16,48], index: 1, kind: input, shape index: {}]
  %s2 = inlined_call_operand.vmem [shape: f32[512,48], index: 2, kind: output, shape index: {}]
  %s3 = sld [smem:[#allocation0]]
  $region18: #{tpu_custom_call.1} parent=0
    _
  %s5 = ssub.s32 1, %s3
  %s6 = scalar_select 0, %s5, %s3
  // Predicated region
  $region2: #{tpu_custom_call.1} parent=0 // pred_check
    _
  $region3: #{tpu_custom_call.1} parent=0 // pred_check_branch
    %8 = sbr.rel (0) target = $region5
  $region4: #{tpu_custom_call.1} parent=0 // pred_region
    _
  $region5: #{tpu_custom_call.1} parent=0 // pred_fallthru
    _
  // Predicated region
  $region6: #{tpu_custom_call.1} parent=0 // pred_check
    _
  $region7: #{tpu_custom_call.1} parent=0 // pred_check_branch
    %10 = sbr.rel (0) target = $region9
  $region8: #{tpu_custom_call.1} parent=0 // pred_region
    _
  $region9: #{tpu_custom_call.1} parent=0 // pred_fallthru
    _
  %v11 = vld [vmem:[%s0] sm:$0xff]
  %v12 = vld [vmem:[%s0 + $0x8] sm:$0xff]
  %v13 = vld [vmem:[%s0 + $0x10] sm:$0xff]
  %v14 = vld [vmem:[%s0 + $0x18] sm:$0xff]
  %v15 = vld [vmem:[%s0 + $0x20] sm:$0xff]
  %v16 = vld [vmem:[%s0 + $0x28] sm:$0xff]
  %v17 = vld [vmem:[%s0 + $0x30] sm:$0xff]
  %v18 = vld [vmem:[%s0 + $0x38] sm:$0xff]
  %v19 = vld [vmem:[%s0 + $0x40] sm:$0xff]
  %v20 = vld [vmem:[%s0 + $0x48] sm:$0xff]
  %v21 = vld [vmem:[%s0 + $0x50] sm:$0xff]
  %v22 = vld [vmem:[%s0 + $0x58] sm:$0xff]
  %v23 = vld [vmem:[%s0 + $0x60] sm:$0xff]
  %v24 = vld [vmem:[%s0 + $0x68] sm:$0xff]
  %v25 = vld [vmem:[%s0 + $0x70] sm:$0xff]
  %v26 = vld [vmem:[%s0 + $0x78] sm:$0xff]
  %v27 = vld [vmem:[%s0 + $0x80] sm:$0xff]
  %v28 = vld [vmem:[%s0 + $0x88] sm:$0xff]
  %v29 = vld [vmem:[%s0 + $0x90] sm:$0xff]
  %v30 = vld [vmem:[%s0 + $0x98] sm:$0xff]
  %v31 = vld [vmem:[%s0 + $0xa0] sm:$0xff]
  %v32 = vld [vmem:[%s0 + $0xa8] sm:$0xff]
  %v33 = vld [vmem:[%s0 + $0xb0] sm:$0xff]
  %v34 = vld [vmem:[%s0 + $0xb8] sm:$0xff]
  %v35 = vld [vmem:[%s0 + $0xc0] sm:$0xff]
  %v36 = vld [vmem:[%s0 + $0xc8] sm:$0xff]
  %v37 = vld [vmem:[%s0 + $0xd0] sm:$0xff]
  %v38 = vld [vmem:[%s0 + $0xd8] sm:$0xff]
  %v39 = vld [vmem:[%s0 + $0xe0] sm:$0xff]
  %v40 = vld [vmem:[%s0 + $0xe8] sm:$0xff]
  %v41 = vld [vmem:[%s0 + $0xf0] sm:$0xff]
  %v42 = vld [vmem:[%s0 + $0xf8] sm:$0xff]
  %v43 = vld [vmem:[%s0 + $0x100] sm:$0xff]
  %v44 = vld [vmem:[%s0 + $0x108] sm:$0xff]
  %v45 = vld [vmem:[%s0 + $0x110] sm:$0xff]
  %v46 = vld [vmem:[%s0 + $0x118] sm:$0xff]
  %v47 = vld [vmem:[%s0 + $0x120] sm:$0xff]
  %v48 = vld [vmem:[%s0 + $0x128] sm:$0xff]
  %v49 = vld [vmem:[%s0 + $0x130] sm:$0xff]
  %v50 = vld [vmem:[%s0 + $0x138] sm:$0xff]
  %v51 = vld [vmem:[%s0 + $0x140] sm:$0xff]
  %v52 = vld [vmem:[%s0 + $0x148] sm:$0xff]
  %v53 = vld [vmem:[%s0 + $0x150] sm:$0xff]
  %v54 = vld [vmem:[%s0 + $0x158] sm:$0xff]
  %v55 = vld [vmem:[%s0 + $0x160] sm:$0xff]
  %v56 = vld [vmem:[%s0 + $0x168] sm:$0xff]
  %v57 = vld [vmem:[%s0 + $0x170] sm:$0xff]
  %v58 = vld [vmem:[%s0 + $0x178] sm:$0xff]
  %v59 = vld [vmem:[%s0 + $0x180] sm:$0xff]
  %v60 = vld [vmem:[%s0 + $0x188] sm:$0xff]
  %v61 = vld [vmem:[%s0 + $0x190] sm:$0xff]
  %v62 = vld [vmem:[%s0 + $0x198] sm:$0xff]
  %v63 = vld [vmem:[%s0 + $0x1a0] sm:$0xff]
  %v64 = vld [vmem:[%s0 + $0x1a8] sm:$0xff]
  %v65 = vld [vmem:[%s0 + $0x1b0] sm:$0xff]
  %v66 = vld [vmem:[%s0 + $0x1b8] sm:$0xff]
  %v67 = vld [vmem:[%s0 + $0x1c0] sm:$0xff]
  %v68 = vld [vmem:[%s0 + $0x1c8] sm:$0xff]
  %v69 = vld [vmem:[%s0 + $0x1d0] sm:$0xff]
  %v70 = vld [vmem:[%s0 + $0x1d8] sm:$0xff]
  %v71 = vld [vmem:[%s0 + $0x1e0] sm:$0xff]
  %v72 = vld [vmem:[%s0 + $0x1e8] sm:$0xff]
  %v73 = vld [vmem:[%s0 + $0x1f0] sm:$0xff]
  %v74 = vld [vmem:[%s0 + $0x1f8] sm:$0xff]
  %v75 = vld [vmem:[%s1] sm:$0xff]
  %v76 = vld [vmem:[%s1 + $0x8] sm:$0xff]
  %vm77 = vcmask 130048
  %v79 = vsel %vm77, %v11, 0
  %v82 = vsel %vm77, %v12, 0
  %v85 = vsel %vm77, %v13, 0
  %v88 = vsel %vm77, %v14, 0
  %v91 = vsel %vm77, %v15, 0
  %v94 = vsel %vm77, %v16, 0
  %v97 = vsel %vm77, %v17, 0
  %v100 = vsel %vm77, %v18, 0
  %v103 = vsel %vm77, %v19, 0
  %v106 = vsel %vm77, %v20, 0
  %v109 = vsel %vm77, %v21, 0
  %v112 = vsel %vm77, %v22, 0
  %v115 = vsel %vm77, %v23, 0
  %v118 = vsel %vm77, %v24, 0
  %v121 = vsel %vm77, %v25, 0
  %v124 = vsel %vm77, %v26, 0
  %v127 = vsel %vm77, %v27, 0
  %v130 = vsel %vm77, %v28, 0
  %v133 = vsel %vm77, %v29, 0
  %v136 = vsel %vm77, %v30, 0
  %v139 = vsel %vm77, %v31, 0
  %v142 = vsel %vm77, %v32, 0
  %v145 = vsel %vm77, %v33, 0
  %v148 = vsel %vm77, %v34, 0
  %v151 = vsel %vm77, %v35, 0
  %v154 = vsel %vm77, %v36, 0
  %v157 = vsel %vm77, %v37, 0
  %v160 = vsel %vm77, %v38, 0
  %v163 = vsel %vm77, %v39, 0
  %v166 = vsel %vm77, %v40, 0
  %v169 = vsel %vm77, %v41, 0
  %v172 = vsel %vm77, %v42, 0
  %v175 = vsel %vm77, %v43, 0
  %v178 = vsel %vm77, %v44, 0
  %v181 = vsel %vm77, %v45, 0
  %v184 = vsel %vm77, %v46, 0
  %v187 = vsel %vm77, %v47, 0
  %v190 = vsel %vm77, %v48, 0
  %v193 = vsel %vm77, %v49, 0
  %v196 = vsel %vm77, %v50, 0
  %v199 = vsel %vm77, %v51, 0
  %v202 = vsel %vm77, %v52, 0
  %v205 = vsel %vm77, %v53, 0
  %v208 = vsel %vm77, %v54, 0
  %v211 = vsel %vm77, %v55, 0
  %v214 = vsel %vm77, %v56, 0
  %v217 = vsel %vm77, %v57, 0
  %v220 = vsel %vm77, %v58, 0
  %v223 = vsel %vm77, %v59, 0
  %v226 = vsel %vm77, %v60, 0
  %v229 = vsel %vm77, %v61, 0
  %v232 = vsel %vm77, %v62, 0
  %v235 = vsel %vm77, %v63, 0
  %v238 = vsel %vm77, %v64, 0
  %v241 = vsel %vm77, %v65, 0
  %v244 = vsel %vm77, %v66, 0
  %v247 = vsel %vm77, %v67, 0
  %v250 = vsel %vm77, %v68, 0
  %v253 = vsel %vm77, %v69, 0
  %v256 = vsel %vm77, %v70, 0
  %v259 = vsel %vm77, %v71, 0
  %v262 = vsel %vm77, %v72, 0
  %v265 = vsel %vm77, %v73, 0
  %v268 = vsel %vm77, %v74, 0
  %270 = vmatpush.msra.mxu0 0.0
  %271 = vmatpush.msra.mxu0 0.0
  %272 = vmatpush.msra.mxu0 0.0
  %273 = vmatpush.msra.mxu0 0.0
  %274 = vmatpush.msra.mxu0 0.0
  %275 = vmatpush.msra.mxu0 0.0
  %276 = vmatpush.msra.mxu0 0.0
  %277 = vmatpush.msra.mxu0 0.0
  %278 = vmatpush.msra.mxu0 0.0
  %279 = vmatpush.msra.mxu0 0.0
  %280 = vmatpush.msra.mxu0 0.0
  %281 = vmatpush.msra.mxu0 0.0
  %282 = vmatpush.msra.mxu0 0.0
  %283 = vmatpush.msra.mxu0 0.0
  %284 = vmatpush.msra.mxu0 %v76
  %285 = vmatpush.msra.mxu0 %v75
  %286 = vmatmul.f32.gmra.mxu0 %v79
  %v287 = vpop.f32.mrf.mxu0
  %v288 = vadd.f32 0.0, %v287
  %289 = vmatmul.f32.gmra.mxu0 %v82
  %v290 = vpop.f32.mrf.mxu0
  %v291 = vadd.f32 0.0, %v290
  %292 = vmatmul.f32.gmra.mxu0 %v85
  %v293 = vpop.f32.mrf.mxu0
  %v294 = vadd.f32 0.0, %v293
  %295 = vmatmul.f32.gmra.mxu0 %v88
  %v296 = vpop.f32.mrf.mxu0
  %v297 = vadd.f32 0.0, %v296
  %298 = vmatmul.f32.gmra.mxu0 %v91
  %v299 = vpop.f32.mrf.mxu0
  %v300 = vadd.f32 0.0, %v299
  %301 = vmatmul.f32.gmra.mxu0 %v94
  %v302 = vpop.f32.mrf.mxu0
  %v303 = vadd.f32 0.0, %v302
  %304 = vmatmul.f32.gmra.mxu0 %v97
  %v305 = vpop.f32.mrf.mxu0
  %v306 = vadd.f32 0.0, %v305
  %307 = vmatmul.f32.gmra.mxu0 %v100
  %v308 = vpop.f32.mrf.mxu0
  %v309 = vadd.f32 0.0, %v308
  %310 = vmatmul.f32.gmra.mxu0 %v103
  %v311 = vpop.f32.mrf.mxu0
  %v312 = vadd.f32 0.0, %v311
  %313 = vmatmul.f32.gmra.mxu0 %v106
  %v314 = vpop.f32.mrf.mxu0
  %v315 = vadd.f32 0.0, %v314
  %316 = vmatmul.f32.gmra.mxu0 %v109
  %v317 = vpop.f32.mrf.mxu0
  %v318 = vadd.f32 0.0, %v317
  %319 = vmatmul.f32.gmra.mxu0 %v112
  %v320 = vpop.f32.mrf.mxu0
  %v321 = vadd.f32 0.0, %v320
  %322 = vmatmul.f32.gmra.mxu0 %v115
  %v323 = vpop.f32.mrf.mxu0
  %v324 = vadd.f32 0.0, %v323
  %325 = vmatmul.f32.gmra.mxu0 %v118
  %v326 = vpop.f32.mrf.mxu0
  %v327 = vadd.f32 0.0, %v326
  %328 = vmatmul.f32.gmra.mxu0 %v121
  %v329 = vpop.f32.mrf.mxu0
  %v330 = vadd.f32 0.0, %v329
  %331 = vmatmul.f32.gmra.mxu0 %v124
  %v332 = vpop.f32.mrf.mxu0
  %v333 = vadd.f32 0.0, %v332
  %334 = vmatmul.f32.gmra.mxu0 %v127
  %v335 = vpop.f32.mrf.mxu0
  %v336 = vadd.f32 0.0, %v335
  %337 = vmatmul.f32.gmra.mxu0 %v130
  %v338 = vpop.f32.mrf.mxu0
  %v339 = vadd.f32 0.0, %v338
  %340 = vmatmul.f32.gmra.mxu0 %v133
  %v341 = vpop.f32.mrf.mxu0
  %v342 = vadd.f32 0.0, %v341
  %343 = vmatmul.f32.gmra.mxu0 %v136
  %v344 = vpop.f32.mrf.mxu0
  %v345 = vadd.f32 0.0, %v344
  %346 = vmatmul.f32.gmra.mxu0 %v139
  %v347 = vpop.f32.mrf.mxu0
  %v348 = vadd.f32 0.0, %v347
  %349 = vmatmul.f32.gmra.mxu0 %v142
  %v350 = vpop.f32.mrf.mxu0
  %v351 = vadd.f32 0.0, %v350
  %352 = vmatmul.f32.gmra.mxu0 %v145
  %v353 = vpop.f32.mrf.mxu0
  %v354 = vadd.f32 0.0, %v353
  %355 = vmatmul.f32.gmra.mxu0 %v148
  %v356 = vpop.f32.mrf.mxu0
  %v357 = vadd.f32 0.0, %v356
  %358 = vmatmul.f32.gmra.mxu0 %v151
  %v359 = vpop.f32.mrf.mxu0
  %v360 = vadd.f32 0.0, %v359
  %361 = vmatmul.f32.gmra.mxu0 %v154
  %v362 = vpop.f32.mrf.mxu0
  %v363 = vadd.f32 0.0, %v362
  %364 = vmatmul.f32.gmra.mxu0 %v157
  %v365 = vpop.f32.mrf.mxu0
  %v366 = vadd.f32 0.0, %v365
  %367 = vmatmul.f32.gmra.mxu0 %v160
  %v368 = vpop.f32.mrf.mxu0
  %v369 = vadd.f32 0.0, %v368
  %370 = vmatmul.f32.gmra.mxu0 %v163
  %v371 = vpop.f32.mrf.mxu0
  %v372 = vadd.f32 0.0, %v371
  %373 = vmatmul.f32.gmra.mxu0 %v166
  %v374 = vpop.f32.mrf.mxu0
  %v375 = vadd.f32 0.0, %v374
  %376 = vmatmul.f32.gmra.mxu0 %v169
  %v377 = vpop.f32.mrf.mxu0
  %v378 = vadd.f32 0.0, %v377
  %379 = vmatmul.f32.gmra.mxu0 %v172
  %v380 = vpop.f32.mrf.mxu0
  %v381 = vadd.f32 0.0, %v380
  %382 = vmatmul.f32.gmra.mxu0 %v175
  %v383 = vpop.f32.mrf.mxu0
  %v384 = vadd.f32 0.0, %v383
  %385 = vmatmul.f32.gmra.mxu0 %v178
  %v386 = vpop.f32.mrf.mxu0
  %v387 = vadd.f32 0.0, %v386
  %388 = vmatmul.f32.gmra.mxu0 %v181
  %v389 = vpop.f32.mrf.mxu0
  %v390 = vadd.f32 0.0, %v389
  %391 = vmatmul.f32.gmra.mxu0 %v184
  %v392 = vpop.f32.mrf.mxu0
  %v393 = vadd.f32 0.0, %v392
  %394 = vmatmul.f32.gmra.mxu0 %v187
  %v395 = vpop.f32.mrf.mxu0
  %v396 = vadd.f32 0.0, %v395
  %397 = vmatmul.f32.gmra.mxu0 %v190
  %v398 = vpop.f32.mrf.mxu0
  %v399 = vadd.f32 0.0, %v398
  %400 = vmatmul.f32.gmra.mxu0 %v193
  %v401 = vpop.f32.mrf.mxu0
  %v402 = vadd.f32 0.0, %v401
  %403 = vmatmul.f32.gmra.mxu0 %v196
  %v404 = vpop.f32.mrf.mxu0
  %v405 = vadd.f32 0.0, %v404
  %406 = vmatmul.f32.gmra.mxu0 %v199
  %v407 = vpop.f32.mrf.mxu0
  %v408 = vadd.f32 0.0, %v407
  %409 = vmatmul.f32.gmra.mxu0 %v202
  %v410 = vpop.f32.mrf.mxu0
  %v411 = vadd.f32 0.0, %v410
  %412 = vmatmul.f32.gmra.mxu0 %v205
  %v413 = vpop.f32.mrf.mxu0
  %v414 = vadd.f32 0.0, %v413
  %415 = vmatmul.f32.gmra.mxu0 %v208
  %v416 = vpop.f32.mrf.mxu0
  %v417 = vadd.f32 0.0, %v416
  %418 = vmatmul.f32.gmra.mxu0 %v211
  %v419 = vpop.f32.mrf.mxu0
  %v420 = vadd.f32 0.0, %v419
  %421 = vmatmul.f32.gmra.mxu0 %v214
  %v422 = vpop.f32.mrf.mxu0
  %v423 = vadd.f32 0.0, %v422
  %424 = vmatmul.f32.gmra.mxu0 %v217
  %v425 = vpop.f32.mrf.mxu0
  %v426 = vadd.f32 0.0, %v425
  %427 = vmatmul.f32.gmra.mxu0 %v220
  %v428 = vpop.f32.mrf.mxu0
  %v429 = vadd.f32 0.0, %v428
  %430 = vmatmul.f32.gmra.mxu0 %v223
  %v431 = vpop.f32.mrf.mxu0
  %v432 = vadd.f32 0.0, %v431
  %433 = vmatmul.f32.gmra.mxu0 %v226
  %v434 = vpop.f32.mrf.mxu0
  %v435 = vadd.f32 0.0, %v434
  %436 = vmatmul.f32.gmra.mxu0 %v229
  %v437 = vpop.f32.mrf.mxu0
  %v438 = vadd.f32 0.0, %v437
  %439 = vmatmul.f32.gmra.mxu0 %v232
  %v440 = vpop.f32.mrf.mxu0
  %v441 = vadd.f32 0.0, %v440
  %442 = vmatmul.f32.gmra.mxu0 %v235
  %v443 = vpop.f32.mrf.mxu0
  %v444 = vadd.f32 0.0, %v443
  %445 = vmatmul.f32.gmra.mxu0 %v238
  %v446 = vpop.f32.mrf.mxu0
  %v447 = vadd.f32 0.0, %v446
  %448 = vmatmul.f32.gmra.mxu0 %v241
  %v449 = vpop.f32.mrf.mxu0
  %v450 = vadd.f32 0.0, %v449
  %451 = vmatmul.f32.gmra.mxu0 %v244
  %v452 = vpop.f32.mrf.mxu0
  %v453 = vadd.f32 0.0, %v452
  %454 = vmatmul.f32.gmra.mxu0 %v247
  %v455 = vpop.f32.mrf.mxu0
  %v456 = vadd.f32 0.0, %v455
  %457 = vmatmul.f32.gmra.mxu0 %v250
  %v458 = vpop.f32.mrf.mxu0
  %v459 = vadd.f32 0.0, %v458
  %460 = vmatmul.f32.gmra.mxu0 %v253
  %v461 = vpop.f32.mrf.mxu0
  %v462 = vadd.f32 0.0, %v461
  %463 = vmatmul.f32.gmra.mxu0 %v256
  %v464 = vpop.f32.mrf.mxu0
  %v465 = vadd.f32 0.0, %v464
  %466 = vmatmul.f32.gmra.mxu0 %v259
  %v467 = vpop.f32.mrf.mxu0
  %v468 = vadd.f32 0.0, %v467
  %469 = vmatmul.f32.gmra.mxu0 %v262
  %v470 = vpop.f32.mrf.mxu0
  %v471 = vadd.f32 0.0, %v470
  %472 = vmatmul.f32.gmra.mxu0 %v265
  %v473 = vpop.f32.mrf.mxu0
  %v474 = vadd.f32 0.0, %v473
  %475 = vmatmul.f32.gmra.mxu0 %v268
  %v476 = vpop.f32.mrf.mxu0
  %v477 = vadd.f32 0.0, %v476
  %478 = vdwg.mxu0
  %vm479 = vcmask 392192
  %480 = vst.msk [vmem:[%s2] sm:$0xff] %vm479, %v288
  %481 = vst.msk [vmem:[%s2 + $0x8] sm:$0xff] %vm479, %v291
  %482 = vst.msk [vmem:[%s2 + $0x10] sm:$0xff] %vm479, %v294
  %483 = vst.msk [vmem:[%s2 + $0x18] sm:$0xff] %vm479, %v297
  %484 = vst.msk [vmem:[%s2 + $0x20] sm:$0xff] %vm479, %v300
  %485 = vst.msk [vmem:[%s2 + $0x28] sm:$0xff] %vm479, %v303
  %486 = vst.msk [vmem:[%s2 + $0x30] sm:$0xff] %vm479, %v306
  %487 = vst.msk [vmem:[%s2 + $0x38] sm:$0xff] %vm479, %v309
  %488 = vst.msk [vmem:[%s2 + $0x40] sm:$0xff] %vm479, %v312
  %489 = vst.msk [vmem:[%s2 + $0x48] sm:$0xff] %vm479, %v315
  %490 = vst.msk [vmem:[%s2 + $0x50] sm:$0xff] %vm479, %v318
  %491 = vst.msk [vmem:[%s2 + $0x58] sm:$0xff] %vm479, %v321
  %492 = vst.msk [vmem:[%s2 + $0x60] sm:$0xff] %vm479, %v324
  %493 = vst.msk [vmem:[%s2 + $0x68] sm:$0xff] %vm479, %v327
  %494 = vst.msk [vmem:[%s2 + $0x70] sm:$0xff] %vm479, %v330
  %495 = vst.msk [vmem:[%s2 + $0x78] sm:$0xff] %vm479, %v333
  %496 = vst.msk [vmem:[%s2 + $0x80] sm:$0xff] %vm479, %v336
  %497 = vst.msk [vmem:[%s2 + $0x88] sm:$0xff] %vm479, %v339
  %498 = vst.msk [vmem:[%s2 + $0x90] sm:$0xff] %vm479, %v342
  %499 = vst.msk [vmem:[%s2 + $0x98] sm:$0xff] %vm479, %v345
  %500 = vst.msk [vmem:[%s2 + $0xa0] sm:$0xff] %vm479, %v348
  %501 = vst.msk [vmem:[%s2 + $0xa8] sm:$0xff] %vm479, %v351
  %502 = vst.msk [vmem:[%s2 + $0xb0] sm:$0xff] %vm479, %v354
  %503 = vst.msk [vmem:[%s2 + $0xb8] sm:$0xff] %vm479, %v357
  %504 = vst.msk [vmem:[%s2 + $0xc0] sm:$0xff] %vm479, %v360
  %505 = vst.msk [vmem:[%s2 + $0xc8] sm:$0xff] %vm479, %v363
  %506 = vst.msk [vmem:[%s2 + $0xd0] sm:$0xff] %vm479, %v366
  %507 = vst.msk [vmem:[%s2 + $0xd8] sm:$0xff] %vm479, %v369
  %508 = vst.msk [vmem:[%s2 + $0xe0] sm:$0xff] %vm479, %v372
  %509 = vst.msk [vmem:[%s2 + $0xe8] sm:$0xff] %vm479, %v375
  %510 = vst.msk [vmem:[%s2 + $0xf0] sm:$0xff] %vm479, %v378
  %511 = vst.msk [vmem:[%s2 + $0xf8] sm:$0xff] %vm479, %v381
  %512 = vst.msk [vmem:[%s2 + $0x100] sm:$0xff] %vm479, %v384
  %513 = vst.msk [vmem:[%s2 + $0x108] sm:$0xff] %vm479, %v387
  %514 = vst.msk [vmem:[%s2 + $0x110] sm:$0xff] %vm479, %v390
  %515 = vst.msk [vmem:[%s2 + $0x118] sm:$0xff] %vm479, %v393
  %516 = vst.msk [vmem:[%s2 + $0x120] sm:$0xff] %vm479, %v396
  %517 = vst.msk [vmem:[%s2 + $0x128] sm:$0xff] %vm479, %v399
  %518 = vst.msk [vmem:[%s2 + $0x130] sm:$0xff] %vm479, %v402
  %519 = vst.msk [vmem:[%s2 + $0x138] sm:$0xff] %vm479, %v405
  %520 = vst.msk [vmem:[%s2 + $0x140] sm:$0xff] %vm479, %v408
  %521 = vst.msk [vmem:[%s2 + $0x148] sm:$0xff] %vm479, %v411
  %522 = vst.msk [vmem:[%s2 + $0x150] sm:$0xff] %vm479, %v414
  %523 = vst.msk [vmem:[%s2 + $0x158] sm:$0xff] %vm479, %v417
  %524 = vst.msk [vmem:[%s2 + $0x160] sm:$0xff] %vm479, %v420
  %525 = vst.msk [vmem:[%s2 + $0x168] sm:$0xff] %vm479, %v423
  %526 = vst.msk [vmem:[%s2 + $0x170] sm:$0xff] %vm479, %v426
  %527 = vst.msk [vmem:[%s2 + $0x178] sm:$0xff] %vm479, %v429
  %528 = vst.msk [vmem:[%s2 + $0x180] sm:$0xff] %vm479, %v432
  %529 = vst.msk [vmem:[%s2 + $0x188] sm:$0xff] %vm479, %v435
  %530 = vst.msk [vmem:[%s2 + $0x190] sm:$0xff] %vm479, %v438
  %531 = vst.msk [vmem:[%s2 + $0x198] sm:$0xff] %vm479, %v441
  %532 = vst.msk [vmem:[%s2 + $0x1a0] sm:$0xff] %vm479, %v444
  %533 = vst.msk [vmem:[%s2 + $0x1a8] sm:$0xff] %vm479, %v447
  %534 = vst.msk [vmem:[%s2 + $0x1b0] sm:$0xff] %vm479, %v450
  %535 = vst.msk [vmem:[%s2 + $0x1b8] sm:$0xff] %vm479, %v453
  %536 = vst.msk [vmem:[%s2 + $0x1c0] sm:$0xff] %vm479, %v456
  %537 = vst.msk [vmem:[%s2 + $0x1c8] sm:$0xff] %vm479, %v459
  %538 = vst.msk [vmem:[%s2 + $0x1d0] sm:$0xff] %vm479, %v462
  %539 = vst.msk [vmem:[%s2 + $0x1d8] sm:$0xff] %vm479, %v465
  %540 = vst.msk [vmem:[%s2 + $0x1e0] sm:$0xff] %vm479, %v468
  %541 = vst.msk [vmem:[%s2 + $0x1e8] sm:$0xff] %vm479, %v471
  %542 = vst.msk [vmem:[%s2 + $0x1f0] sm:$0xff] %vm479, %v474
  %543 = vst.msk [vmem:[%s2 + $0x1f8] sm:$0xff] %vm479, %v477
  // Predicated region
  $region10: #{tpu_custom_call.1} parent=0 // pred_check
    _
  $region11: #{tpu_custom_call.1} parent=0 // pred_check_branch
    %545 = sbr.rel (0) target = $region13
  $region12: #{tpu_custom_call.1} parent=0 // pred_region
    _
  $region13: #{tpu_custom_call.1} parent=0 // pred_fallthru
    _
  // Predicated region
  $region14: #{tpu_custom_call.1} parent=0 // pred_check
    _
  $region15: #{tpu_custom_call.1} parent=0 // pred_check_branch
    %547 = sbr.rel (0) target = $region17
  $region16: #{tpu_custom_call.1} parent=0 // pred_region
    _
  $region17: #{tpu_custom_call.1} parent=0 // pred_fallthru
    _

</llo_original>
